<compile_context>
chip_gen: v7x
topology: tpu7x:2x2x1
jax: 0.10.0
libtpu: 0.0.40
codegen_flags: <defaults>
</compile_context>

<pallas_src>
import functools

import jax
import jax.numpy as jnp
from jax import lax
from jax.experimental import pallas as pl
from jax.experimental.pallas import tpu as pltpu


def attention_kernel(x_ref, wqkv_ref, o_ref, *, dim):
    x = x_ref[...]          # [seq, dim], f32
    w_qkv = wqkv_ref[...]   # [dim, 3*dim], f32

    # Fused QKV projection: one MXU matmul instead of three.
    qkv = jnp.dot(x, w_qkv, preferred_element_type=jnp.float32)  # [seq, 3*dim]
    q = qkv[:, 0:dim]
    k = qkv[:, dim:2 * dim]
    v = qkv[:, 2 * dim:3 * dim]

    # Scores: Q @ K.T via dot_general (contract last dims) — no explicit
    # transpose of K is materialized.
    s = lax.dot_general(
        q, k,
        dimension_numbers=(((1,), (1,)), ((), ())),
        preferred_element_type=jnp.float32,
    )  # [seq, seq]

    # Row softmax over axis=1 (matches torch.nn.functional.softmax(..., dim=1)
    # on a 2-D tensor).  Exact divide: the approx EUP reciprocal is not
    # accurate enough for a 1e-4 tolerance.
    m = jnp.max(s, axis=1, keepdims=True)
    e = jnp.exp(s - m)
    denom = jnp.sum(e, axis=1, keepdims=True)
    p = e / denom

    # Output: attn @ V -> [seq, dim]
    o_ref[...] = jnp.dot(p, v, preferred_element_type=jnp.float32)


def attention_pallas(x, w_q, w_k, w_v):
    seq, dim = x.shape
    # Fuse the three projection weights into one [dim, 3*dim] matrix so the
    # kernel does a single projection matmul.
    w_qkv = jnp.concatenate([w_q, w_k, w_v], axis=1)

    kernel = functools.partial(attention_kernel, dim=dim)
    return pl.pallas_call(
        kernel,
        out_shape=jax.ShapeDtypeStruct((seq, dim), jnp.float32),
        in_specs=[
            pl.BlockSpec(memory_space=pltpu.MemorySpace.VMEM),  # x
            pl.BlockSpec(memory_space=pltpu.MemorySpace.VMEM),  # W_qkv
        ],
        out_specs=pl.BlockSpec(memory_space=pltpu.MemorySpace.VMEM),
    )(x, w_qkv)


def attention_ref(x, w_q, w_k, w_v):
    # Full-f32 matmuls so the reference matches the kernel's f32 MXU path.
    hp = lax.Precision.HIGHEST
    q = jnp.dot(x, w_q, precision=hp)
    k = jnp.dot(x, w_k, precision=hp)
    v = jnp.dot(x, w_v, precision=hp)
    s = jnp.dot(q, k.T, precision=hp)
    p = jax.nn.softmax(s, axis=1)
    return jnp.dot(p, v, precision=hp)


if __name__ == "__main__":
    key = jax.random.PRNGKey(0)
    k_x, k_q, k_k, k_v = jax.random.split(key, 4)

    seq, dim = 8, 32

    # Deterministic inputs / parameters (torch.rand -> uniform [0, 1)).
    x = jax.random.normal(k_x, (seq, dim), dtype=jnp.float32)
    w_q = jax.random.uniform(k_q, (dim, dim), dtype=jnp.float32)
    w_k = jax.random.uniform(k_k, (dim, dim), dtype=jnp.float32)
    w_v = jax.random.uniform(k_v, (dim, dim), dtype=jnp.float32)

    y = attention_pallas(x, w_q, w_k, w_v)
    y = jax.block_until_ready(y)

    y_ref = attention_ref(x, w_q, w_k, w_v)
    assert jnp.allclose(y, y_ref, atol=1e-4, rtol=1e-4), "mismatch vs reference"

    print("KERNEL_OK")
</pallas_src>

<mosaic_0001>
module attributes {stable_mosaic.version = 11 : i64} {
  func.func @attention_kernel(%arg0: memref<8x32xf32, #tpu.memory_space<vmem>>, %arg1: memref<32x96xf32, #tpu.memory_space<vmem>>, %arg2: memref<8x32xf32, #tpu.memory_space<vmem>>) attributes {dimension_semantics = [], scalar_prefetch = 0 : i64, scratch_operands = 0 : i64, tpu.core_type = #tpu.core_type<tc>} {
    %c0 = arith.constant 0 : index
    %c0_0 = arith.constant 0 : index
    %0 = vector.load %arg0[%c0, %c0_0] : memref<8x32xf32, #tpu.memory_space<vmem>>, vector<8x32xf32>
    %c0_1 = arith.constant 0 : index
    %c0_2 = arith.constant 0 : index
    %1 = vector.load %arg1[%c0_1, %c0_2] : memref<32x96xf32, #tpu.memory_space<vmem>>, vector<32x96xf32>
    %cst = arith.constant dense<0.000000e+00> : vector<8x96xf32>
    %2 = tpu.matmul %0, %1, %cst {dimension_numbers = #tpu.dot_dimension_numbers<[1], [0], [0], [1], [0, 0, 1, 1], [], []>} : vector<8x32xf32>, vector<32x96xf32>, vector<8x96xf32> -> vector<8x96xf32>
    %3 = vector.extract_strided_slice %2 {offsets = [0, 0], sizes = [8, 32], strides = [1, 1]} : vector<8x96xf32> to vector<8x32xf32>
    %4 = vector.extract_strided_slice %2 {offsets = [0, 32], sizes = [8, 32], strides = [1, 1]} : vector<8x96xf32> to vector<8x32xf32>
    %5 = vector.extract_strided_slice %2 {offsets = [0, 64], sizes = [8, 32], strides = [1, 1]} : vector<8x96xf32> to vector<8x32xf32>
    %cst_3 = arith.constant dense<0.000000e+00> : vector<8x8xf32>
    %6 = tpu.matmul %3, %4, %cst_3 {dimension_numbers = #tpu.dot_dimension_numbers<[1], [1], [0], [0], [0, 0, 1, 0], [], []>} : vector<8x32xf32>, vector<8x32xf32>, vector<8x8xf32> -> vector<8x8xf32>
    %cst_4 = arith.constant dense<0xFF800000> : vector<8xf32>
    %7 = vector.multi_reduction <maximumf>, %6, %cst_4 [1] : vector<8x8xf32> to vector<8xf32>
    %8 = vector.shape_cast %7 : vector<8xf32> to vector<8x1xf32>
    %9 = vector.broadcast %8 : vector<8x1xf32> to vector<8x8xf32>
    %10 = arith.subf %6, %9 : vector<8x8xf32>
    %11 = math.exp %10 : vector<8x8xf32>
    %cst_5 = arith.constant dense<0.000000e+00> : vector<8xf32>
    %12 = vector.multi_reduction <add>, %11, %cst_5 [1] : vector<8x8xf32> to vector<8xf32>
    %13 = vector.shape_cast %12 : vector<8xf32> to vector<8x1xf32>
    %14 = vector.broadcast %13 : vector<8x1xf32> to vector<8x8xf32>
    %15 = arith.divf %11, %14 : vector<8x8xf32>
    %cst_6 = arith.constant dense<0.000000e+00> : vector<8x32xf32>
    %16 = tpu.matmul %15, %5, %cst_6 {dimension_numbers = #tpu.dot_dimension_numbers<[1], [0], [0], [1], [0, 0, 1, 1], [], []>} : vector<8x8xf32>, vector<8x32xf32>, vector<8x32xf32> -> vector<8x32xf32>
    %c0_7 = arith.constant 0 : index
    %c0_8 = arith.constant 0 : index
    %17 = vector.load %arg2[%c0_7, %c0_8] : memref<8x32xf32, #tpu.memory_space<vmem>>, vector<8x32xf32>
    tpu.vector_store %arg2[%c0_7, %c0_8], %16 {strides = array<i32>} : memref<8x32xf32, #tpu.memory_space<vmem>>, vector<8x32xf32>,
    return
  }
}

</mosaic_0001>

<llo_original>
// kernel: tpu_custom_call.1
$region0: #{tpu_custom_call.1}
  #allocation0 [shape = 'u32[]', space=smem, size = 0x4, offset = 0x4, fixed_abs, tag = 'smem constant byte address 0x4 - core index']
  #allocation1 [shape = 'u32[144,128]{1,0:T(1,128)}', space=vmem, size = 0x12000, scoped, tag = 'internal scratch']
  %s0 = inlined_call_operand.hbm [shape: f32[8,32], index: 0, kind: input, shape index: {}]
  %s1 = inlined_call_operand.hbm [shape: f32[32,96], index: 1, kind: input, shape index: {}]
  %s2 = inlined_call_operand.hbm [shape: f32[8,32], index: 2, kind: output, shape index: {}]
  %s3 = sld [smem:[#allocation0]]
  $region26: #{tpu_custom_call.1} parent=0
    _
  %s5 = ssub.s32 1, %s3
  %s6 = scalar_select 0, %s5, %s3
  $region1: #{tpu_custom_call.1} parent=0
    #allocation2 [shape = 'u8[4096]{0}', space=vmem, size = 0x1000, scoped, tag = 'input window, operand 0, single buffered']
    #allocation3 [shape = 's32[1]{0}', space=sflag, size = 0x4, scoped, tag = 'scoped memory for tpu_custom_call.1']
    #allocation4 [shape = 's32[1]{0}', space=sflag, size = 0x4, scoped, tag = 'scoped memory for tpu_custom_call.1']
    #allocation5 [shape = 'u8[16384]{0}', space=vmem, size = 0x4000, scoped, tag = 'input window, operand 1, single buffered']
    #allocation6 [shape = 's32[1]{0}', space=sflag, size = 0x4, scoped, tag = 'scoped memory for tpu_custom_call.1']
    #allocation7 [shape = 'u8[4096]{0}', space=vmem, size = 0x1000, scoped, tag = 'output window, operand 0, single buffered']
    %7 = vsyncpa [#allocation3], 0
    %8 = vsyncpa [#allocation6], 0
    %9 = vsyncpa [#allocation4], 0
    // Predicated region
    $region2: #{tpu_custom_call.1} parent=1 // pred_check
      _
    $region3: #{tpu_custom_call.1} parent=1 // pred_check_branch
      %11 = sbr.rel (0) target = $region5
    $region4: #{tpu_custom_call.1} parent=1 // pred_region
      %s13 = ssub.s32 128, 128
      %14 = vsyncadd [#allocation3], %s13
      %s16 = sshll.u32 [#allocation2], 4
      %s17 = int_to_ptr.vmem [resolvable:$true] %s16
      %19 = dma.hbm_to_vmem [thread:$0]  %s0, 128, %s17, [#allocation3]
    $region5: #{tpu_custom_call.1} parent=1 // pred_fallthru
      _
    // Predicated region
    $region6: #{tpu_custom_call.1} parent=1 // pred_check
      _
    $region7: #{tpu_custom_call.1} parent=1 // pred_check_branch
      %21 = sbr.rel (0) target = $region9
    $region8: #{tpu_custom_call.1} parent=1 // pred_region
      %s23 = ssub.s32 512, 512
      %24 = vsyncadd [#allocation6], %s23
      %s25 = sshll.u32 [#allocation5], 4
      %s26 = int_to_ptr.vmem [resolvable:$true] %s25
      %31 = dma.hbm_to_vmem [thread:$0]  %s1, 512, %s26, [#allocation6], 128, 128, 8
    $region9: #{tpu_custom_call.1} parent=1 // pred_fallthru
      _
    // Predicated region
    $region10: #{tpu_custom_call.1} parent=1 // pred_check
      _
    $region11: #{tpu_custom_call.1} parent=1 // pred_check_branch
      %33 = sbr.rel (0) target = $region13
    $region12: #{tpu_custom_call.1} parent=1 // pred_region
      %34 = dma.done [#allocation3], 128
    $region13: #{tpu_custom_call.1} parent=1 // pred_fallthru
      _
    // Predicated region
    $region14: #{tpu_custom_call.1} parent=1 // pred_check
      _
    $region15: #{tpu_custom_call.1} parent=1 // pred_check_branch
      %36 = sbr.rel (0) target = $region17
    $region16: #{tpu_custom_call.1} parent=1 // pred_region
      %37 = dma.done [#allocation6], 512
    $region17: #{tpu_custom_call.1} parent=1 // pred_fallthru
      _
    %v38 = vld [vmem:[#allocation2] sm:$0xff]
    %v39 = vld [vmem:[#allocation5] sm:$0xff]
    %v40 = vld [vmem:[#allocation5 + $0x8] sm:$0xff]
    %v41 = vld [vmem:[#allocation5 + $0x10] sm:$0xff]
    %v42 = vld [vmem:[#allocation5 + $0x18] sm:$0xff]
    %vm43 = vcmask 261120
    %v45 = vsel %vm43, %v38, 0
    %47 = vmatprep.subr.mxu0 0.0
    %48 = vmatpush1.msra.mxu0 %v39
    %49 = vmatprep.subr.mxu0 0.0
    %50 = vmatpush1.msra.mxu0 %v40
    %51 = vmatprep.subr.mxu0 0.0
    %52 = vmatpush1.msra.mxu0 %v41
    %53 = vmatprep.subr.mxu0 0.0
    %54 = vmatpush1.msra.mxu0 %v42
    %55 = vmatprep.subr.mxu0 0.0
    %56 = vmatpush1.msra.mxu0 0.0
    %57 = vmatprep.subr.mxu0 0.0
    %58 = vmatpush1.msra.mxu0 0.0
    %59 = vmatprep.subr.mxu0 0.0
    %60 = vmatpush1.msra.mxu0 0.0
    %61 = vmatprep.subr.mxu0 0.0
    %62 = vmatpush1.msra.mxu0 0.0
    %63 = vmatprep.subr.mxu0 0.0
    %64 = vmatpush1.msra.mxu0 0.0
    %65 = vmatprep.subr.mxu0 0.0
    %66 = vmatpush1.msra.mxu0 0.0
    %67 = vmatprep.subr.mxu0 0.0
    %68 = vmatpush1.msra.mxu0 0.0
    %69 = vmatprep.subr.mxu0 0.0
    %70 = vmatpush1.msra.mxu0 0.0
    %71 = vmatprep.subr.mxu0 0.0
    %72 = vmatpush1.msra.mxu0 0.0
    %73 = vmatprep.subr.mxu0 0.0
    %74 = vmatpush1.msra.mxu0 0.0
    %75 = vmatprep.subr.mxu0 0.0
    %76 = vmatpush1.msra.mxu0 0.0
    %77 = vmatprep.subr.mxu0 0.0
    %78 = vmatpush1.msra.mxu0 0.0
    %79 = vmatprep.subr.mxu0 0.0
    %80 = vmatpush1.msra.mxu0 0.0
    %81 = vmatprep.subr.mxu0 0.0
    %82 = vmatpush1.msra.mxu0 0.0
    %83 = vmatprep.subr.mxu0 0.0
    %84 = vmatpush1.msra.mxu0 0.0
    %85 = vmatprep.subr.mxu0 0.0
    %86 = vmatpush1.msra.mxu0 0.0
    %87 = vmatprep.subr.mxu0 0.0
    %88 = vmatpush1.msra.mxu0 0.0
    %89 = vmatprep.subr.mxu0 0.0
    %90 = vmatpush1.msra.mxu0 0.0
    %91 = vmatprep.subr.mxu0 0.0
    %92 = vmatpush1.msra.mxu0 0.0
    %93 = vmatprep.subr.mxu0 0.0
    %94 = vmatpush1.msra.mxu0 0.0
    %95 = vmatprep.subr.mxu0 0.0
    %96 = vmatpush1.msra.mxu0 0.0
    %97 = vmatprep.subr.mxu0 0.0
    %98 = vmatpush1.msra.mxu0 0.0
    %99 = vmatprep.subr.mxu0 0.0
    %100 = vmatpush1.msra.mxu0 0.0
    %101 = vmatprep.subr.mxu0 0.0
    %102 = vmatpush1.msra.mxu0 0.0
    %103 = vmatprep.subr.mxu0 0.0
    %104 = vmatpush1.msra.mxu0 0.0
    %105 = vmatprep.subr.mxu0 0.0
    %106 = vmatpush1.msra.mxu0 0.0
    %107 = vmatprep.subr.mxu0 0.0
    %108 = vmatpush1.msra.mxu0 0.0
    %109 = vmatprep.subr.mxu0 0.0
    %110 = vmatpush1.msra.mxu0 0.0
    %111 = vmatprep.mubr.f32.mxu0 0.0
    %112 = vmatmul.mubr.f32.gmra.mrb[0].mxu0 %v45
    %v113 = vpop.f32.mrb[0].mxu0
    %v114 = vadd.f32 0.0, %v113
    %v115 = vpop.f32.mrb[0].mxu0
    %116 = vdwg.mxu0
    %118 = vrot.lane.b32.xlu0 %v114, 96
    %v119 = vpop.permute.xlu0 %118
    %v120 = vsel %vm43, %v114, 0
    %v122 = vsel %vm43, %v119, 0
    %124 = vmatprep.subr.mxu0 0.0
    %125 = vmatpush1.xpose.msra.mxu0 %v122
    %126 = vmatprep.subr.mxu0 0.0
    %127 = vmatpush1.xpose.msra.mxu0 0.0
    %128 = vmatprep.subr.mxu0 0.0
    %129 = vmatpush1.xpose.msra.mxu0 0.0
    %130 = vmatprep.subr.mxu0 0.0
    %131 = vmatpush1.xpose.msra.mxu0 0.0
    %132 = vmatprep.subr.mxu0 0.0
    %133 = vmatpush1.xpose.msra.mxu0 0.0
    %134 = vmatprep.subr.mxu0 0.0
    %135 = vmatpush1.xpose.msra.mxu0 0.0
    %136 = vmatprep.subr.mxu0 0.0
    %137 = vmatpush1.xpose.msra.mxu0 0.0
    %138 = vmatprep.subr.mxu0 0.0
    %139 = vmatpush1.xpose.msra.mxu0 0.0
    %140 = vmatprep.subr.mxu0 0.0
    %141 = vmatpush1.xpose.msra.mxu0 0.0
    %142 = vmatprep.subr.mxu0 0.0
    %143 = vmatpush1.xpose.msra.mxu0 0.0
    %144 = vmatprep.subr.mxu0 0.0
    %145 = vmatpush1.xpose.msra.mxu0 0.0
    %146 = vmatprep.subr.mxu0 0.0
    %147 = vmatpush1.xpose.msra.mxu0 0.0
    %148 = vmatprep.subr.mxu0 0.0
    %149 = vmatpush1.xpose.msra.mxu0 0.0
    %150 = vmatprep.subr.mxu0 0.0
    %151 = vmatpush1.xpose.msra.mxu0 0.0
    %152 = vmatprep.subr.mxu0 0.0
    %153 = vmatpush1.xpose.msra.mxu0 0.0
    %154 = vmatprep.subr.mxu0 0.0
    %155 = vmatpush1.xpose.msra.mxu0 0.0
    %156 = vmatprep.subr.mxu0 0.0
    %157 = vmatpush1.xpose.msra.mxu0 0.0
    %158 = vmatprep.subr.mxu0 0.0
    %159 = vmatpush1.xpose.msra.mxu0 0.0
    %160 = vmatprep.subr.mxu0 0.0
    %161 = vmatpush1.xpose.msra.mxu0 0.0
    %162 = vmatprep.subr.mxu0 0.0
    %163 = vmatpush1.xpose.msra.mxu0 0.0
    %164 = vmatprep.subr.mxu0 0.0
    %165 = vmatpush1.xpose.msra.mxu0 0.0
    %166 = vmatprep.subr.mxu0 0.0
    %167 = vmatpush1.xpose.msra.mxu0 0.0
    %168 = vmatprep.subr.mxu0 0.0
    %169 = vmatpush1.xpose.msra.mxu0 0.0
    %170 = vmatprep.subr.mxu0 0.0
    %171 = vmatpush1.xpose.msra.mxu0 0.0
    %172 = vmatprep.subr.mxu0 0.0
    %173 = vmatpush1.xpose.msra.mxu0 0.0
    %174 = vmatprep.subr.mxu0 0.0
    %175 = vmatpush1.xpose.msra.mxu0 0.0
    %176 = vmatprep.subr.mxu0 0.0
    %177 = vmatpush1.xpose.msra.mxu0 0.0
    %178 = vmatprep.subr.mxu0 0.0
    %179 = vmatpush1.xpose.msra.mxu0 0.0
    %180 = vmatprep.subr.mxu0 0.0
    %181 = vmatpush1.xpose.msra.mxu0 0.0
    %182 = vmatprep.subr.mxu0 0.0
    %183 = vmatpush1.xpose.msra.mxu0 0.0
    %184 = vmatprep.subr.mxu0 0.0
    %185 = vmatpush1.xpose.msra.mxu0 0.0
    %186 = vmatprep.subr.mxu0 0.0
    %187 = vmatpush1.xpose.msra.mxu0 0.0
    %188 = vmatprep.mubr.f32.mxu0 0.0
    %189 = vmatmul.mubr.f32.gmra.mrb[0].mxu0 %v120
    %v190 = vpop.f32.mrb[0].mxu0
    %v191 = vadd.f32 0.0, %v190
    %v192 = vpop.f32.mrb[0].mxu0
    %193 = vdwg.mxu0
    %vm194 = vcmask 64512
    %v195 = vsel %vm194, %v191, -inf
    %196 = vmax.xlane.f32.xlu0 %v195
    %v197 = vpop.xlane.xlu0 %196
    %v198 = vsub.f32 %v191, %v197
    %v199 = vmul.f32 %v198, 1.442695
    %v200 = vpow.pop %v199
    %v201 = vsel %vm194, %v200, 0.0
    %202 = vadd.xlane.f32.xlu0 %v201
    %v203 = vpop.xlane.xlu0 %202
    %v204 = vrcp.pop %v203
    %v205 = vmul.f32 %v200, %v204
    %206 = vrot.lane.b32.xlu0 %v114, 64
    %v207 = vpop.permute.xlu0 %206
    %v210 = vsel %vm194, %v205, 0
    %212 = vmatprep.subr.mxu0 0.0
    %213 = vmatpush1.msra.mxu0 %v207
    %214 = vmatprep.subr.mxu0 0.0
    %215 = vmatpush1.msra.mxu0 0.0
    %216 = vmatprep.subr.mxu0 0.0
    %217 = vmatpush1.msra.mxu0 0.0
    %218 = vmatprep.subr.mxu0 0.0
    %219 = vmatpush1.msra.mxu0 0.0
    %220 = vmatprep.subr.mxu0 0.0
    %221 = vmatpush1.msra.mxu0 0.0
    %222 = vmatprep.subr.mxu0 0.0
    %223 = vmatpush1.msra.mxu0 0.0
    %224 = vmatprep.subr.mxu0 0.0
    %225 = vmatpush1.msra.mxu0 0.0
    %226 = vmatprep.subr.mxu0 0.0
    %227 = vmatpush1.msra.mxu0 0.0
    %228 = vmatprep.subr.mxu0 0.0
    %229 = vmatpush1.msra.mxu0 0.0
    %230 = vmatprep.subr.mxu0 0.0
    %231 = vmatpush1.msra.mxu0 0.0
    %232 = vmatprep.subr.mxu0 0.0
    %233 = vmatpush1.msra.mxu0 0.0
    %234 = vmatprep.subr.mxu0 0.0
    %235 = vmatpush1.msra.mxu0 0.0
    %236 = vmatprep.subr.mxu0 0.0
    %237 = vmatpush1.msra.mxu0 0.0
    %238 = vmatprep.subr.mxu0 0.0
    %239 = vmatpush1.msra.mxu0 0.0
    %240 = vmatprep.subr.mxu0 0.0
    %241 = vmatpush1.msra.mxu0 0.0
    %242 = vmatprep.subr.mxu0 0.0
    %243 = vmatpush1.msra.mxu0 0.0
    %244 = vmatprep.subr.mxu0 0.0
    %245 = vmatpush1.msra.mxu0 0.0
    %246 = vmatprep.subr.mxu0 0.0
    %247 = vmatpush1.msra.mxu0 0.0
    %248 = vmatprep.subr.mxu0 0.0
    %249 = vmatpush1.msra.mxu0 0.0
    %250 = vmatprep.subr.mxu0 0.0
    %251 = vmatpush1.msra.mxu0 0.0
    %252 = vmatprep.subr.mxu0 0.0
    %253 = vmatpush1.msra.mxu0 0.0
    %254 = vmatprep.subr.mxu0 0.0
    %255 = vmatpush1.msra.mxu0 0.0
    %256 = vmatprep.subr.mxu0 0.0
    %257 = vmatpush1.msra.mxu0 0.0
    %258 = vmatprep.subr.mxu0 0.0
    %259 = vmatpush1.msra.mxu0 0.0
    %260 = vmatprep.subr.mxu0 0.0
    %261 = vmatpush1.msra.mxu0 0.0
    %262 = vmatprep.subr.mxu0 0.0
    %263 = vmatpush1.msra.mxu0 0.0
    %264 = vmatprep.subr.mxu0 0.0
    %265 = vmatpush1.msra.mxu0 0.0
    %266 = vmatprep.subr.mxu0 0.0
    %267 = vmatpush1.msra.mxu0 0.0
    %268 = vmatprep.subr.mxu0 0.0
    %269 = vmatpush1.msra.mxu0 0.0
    %270 = vmatprep.subr.mxu0 0.0
    %271 = vmatpush1.msra.mxu0 0.0
    %272 = vmatprep.subr.mxu0 0.0
    %273 = vmatpush1.msra.mxu0 0.0
    %274 = vmatprep.subr.mxu0 0.0
    %275 = vmatpush1.msra.mxu0 0.0
    %276 = vmatprep.mubr.f32.mxu0 0.0
    %277 = vmatmul.mubr.f32.gmra.mrb[0].mxu0 %v210
    %v278 = vpop.f32.mrb[0].mxu0
    %v279 = vadd.f32 0.0, %v278
    %v280 = vpop.f32.mrb[0].mxu0
    %281 = vdwg.mxu0
    %282 = vst.msk [vmem:[#allocation7] sm:$0xff] %vm43, %v279
    // Predicated region
    $region18: #{tpu_custom_call.1} parent=1 // pred_check
      _
    $region19: #{tpu_custom_call.1} parent=1 // pred_check_branch
      %284 = sbr.rel (0) target = $region21
    $region20: #{tpu_custom_call.1} parent=1 // pred_region
      %s286 = ssub.s32 128, 128
      %287 = vsyncadd [#allocation4], %s286
      %s289 = sshll.u32 [#allocation7], 4
      %s290 = int_to_ptr.vmem [resolvable:$true] %s289
      %292 = dma.vmem_to_hbm [thread:$0]  %s290, 128, %s2, [#allocation4]
    $region21: #{tpu_custom_call.1} parent=1 // pred_fallthru
      _
    // Predicated region
    $region22: #{tpu_custom_call.1} parent=1 // pred_check
      _
    $region23: #{tpu_custom_call.1} parent=1 // pred_check_branch
      %294 = sbr.rel (0) target = $region25
    $region24: #{tpu_custom_call.1} parent=1 // pred_region
      %295 = dma.done [#allocation4], 128
    $region25: #{tpu_custom_call.1} parent=1 // pred_fallthru
      _
    %296 = vsyncpa [#allocation3], 1
    %297 = vsyncpa [#allocation6], 1
    %298 = vsyncpa [#allocation4], 1

</llo_original>
